<compile_context>
chip_gen: v7x
topology: tpu7x:2x2x1
jax: 0.10.0
libtpu: 0.0.40
codegen_flags: <defaults>
</compile_context>

<pallas_src>
import functools

import jax
import jax.numpy as jnp
from jax import lax
from jax.experimental import pallas as pl
from jax.experimental.pallas import tpu as pltpu

EPS = 1e-5

ONEHOT_VMEM_CAP = 2 * 1024 * 1024   # bound on the (TOK_BLK, V) one-hot temp
ONEHOT_MAX_VOCAB = 4096             # above this the one-hot VPU/MXU waste dominates
DMA_NBUF = 3                        # gather-buffer depth for the HBM row-DMA path


def _round_up(x, m):
    return (x + m - 1) // m * m


def _vmem_padded_bytes(rows, cols, itemsize):
    """Approximate VMEM footprint of a (rows, cols) array after (8*pack,128) tiling."""
    sub = 32 // itemsize                      # f32: 8 sublanes, bf16: 16, ...
    return _round_up(max(rows, 1), sub) * _round_up(max(cols, 1), 128) * itemsize


def _layernorm_rows(v, gamma, beta):
    """v: (T, D) f32; gamma/beta: (1, D) f32 -> (T, D) f32."""
    mean = jnp.mean(v, axis=-1, keepdims=True)
    centered = v - mean
    var = jnp.mean(centered * centered, axis=-1, keepdims=True)
    inv = lax.rsqrt(var + EPS)
    return centered * inv * gamma + beta


# ----------------------------------------------------------------------------
# Path A: VMEM-resident bf16 table, gather as one-hot MXU matmul (small vocab).
# ----------------------------------------------------------------------------
def _embed_ln_resident_kernel(ids_ref, emb_ref, gamma_ref, beta_ref, out_ref):
    ids = ids_ref[...]                                   # (TOK_BLK, 1) int32
    tok_blk = ids.shape[0]
    vocab = emb_ref.shape[0]
    col = lax.broadcasted_iota(jnp.int32, (tok_blk, vocab), 1)
    onehot = (col == ids).astype(emb_ref.dtype)          # (TOK_BLK, V) bf16
    # bf16 x bf16 @ default precision: single MXU pass, exact w.r.t. the stored
    # bf16 rows (the one-hot selects exactly one row per token).
    gathered = jnp.dot(onehot, emb_ref[...],
                       preferred_element_type=jnp.float32)  # (TOK_BLK, D) f32
    y = _layernorm_rows(gathered, gamma_ref[...], beta_ref[...])
    out_ref[...] = y.astype(out_ref.dtype)


# ----------------------------------------------------------------------------
# Path B: table in HBM, multi-buffered row-DMA gather (large vocab).
# ----------------------------------------------------------------------------
def _embed_ln_dma_kernel(ids_smem, gamma_ref, beta_ref, emb_hbm, out_ref,
                         gbuf, sems, *, tok_blk, n_inner, nbuf, unroll):
    outer = pl.program_id(0)
    inner = pl.program_id(1)

    def issue_block(inner_idx, slot):
        """Start one row DMA per token of block (outer, inner_idx) into gbuf[slot]."""
        base = (outer * n_inner + inner_idx) * tok_blk

        def body(t, carry):
            row = ids_smem[base + t]
            pltpu.make_async_copy(
                emb_hbm.at[pl.ds(row, 1)],          # (1, D) row in HBM
                gbuf.at[slot, pl.ds(t, 1)],         # (1, D) row in VMEM
                sems.at[slot],
            ).start()
            return carry

        # Unrolled so the LLO scheduler can pack descriptor issues back-to-back
        # on the scalar/vector-misc slots (the saturating slots here).
        lax.fori_loop(0, tok_blk, body, 0, unroll=unroll)

    # Prime this core's stream: blocks 0 .. nbuf-2 of the inner axis.
    @pl.when(inner == 0)
    def _():
        for j in range(nbuf - 1):
            if j < n_inner:
                issue_block(j, j)

    # Steady-state prefetch: block inner + (nbuf - 1) -> up to nbuf blocks in flight.
    @pl.when(inner + (nbuf - 1) < n_inner)
    def _():
        issue_block(inner + (nbuf - 1), (inner + (nbuf - 1)) % nbuf)

    slot = inner % nbuf
    # ONE aggregate wait for all tok_blk row copies of the current block: each
    # row DMA signals sems[slot] by its byte count, so a single wait sized for
    # the whole (tok_blk, D) slot consumes exactly the same total.
    pltpu.make_async_copy(gbuf.at[slot], gbuf.at[slot], sems.at[slot]).wait()

    v = gbuf[slot].astype(jnp.float32)                   # (TOK_BLK, D) f32
    y = _layernorm_rows(v, gamma_ref[...], beta_ref[...])
    out_ref[...] = y.astype(out_ref.dtype)


# ----------------------------------------------------------------------------
# Wrapper
# ----------------------------------------------------------------------------
def embedding_forward(ids, emb_table, gamma, beta, *, tok_blk=None,
                      force_dma=False, table_vmem_budget=None,
                      out_dtype=jnp.float32):
    """ids: [B, S] int; emb_table: [V, D]; gamma/beta: [D]. Returns [B, S, D].

    Small vocab -> resident bf16 table + one-hot MXU gather (bf16-rounded rows).
    Large vocab -> f32 table stays in HBM, multi-buffered row-DMA gather (exact).
    """
    B, S = ids.shape
    V, D = emb_table.shape
    n_tok = B * S

    # Per-generation VMEM capacity (v5e/v6e: 128 MiB, v7x: 64 MiB per core).
    try:
        vmem_cap = int(pltpu.get_tpu_info().vmem_capacity_bytes)
    except Exception:
        vmem_cap = 64 * 1024 * 1024          # conservative (v7x) fallback
    if table_vmem_budget is None:
        table_vmem_budget = vmem_cap // 4

    out_itemsize = jnp.dtype(out_dtype).itemsize
    tbl_itemsize = emb_table.dtype.itemsize

    table_vmem_bytes = _vmem_padded_bytes(V, D, 2)       # resident copy is bf16
    use_resident = ((not force_dma)
                    and table_vmem_bytes <= table_vmem_budget
                    and V <= ONEHOT_MAX_VOCAB)
    # TODO(synk): add a direct-gather resident strategy (scalar-prefetched ids +
    # dynamic row reads from a VMEM-resident table) for 4K < V <= VMEM budget,
    # instead of falling back to the latency-bound HBM row-DMA path.
    # TODO(synk): when D < 128 and 128 % D == 0, present a lane-dense output
    # slab (n_pad*D/128, 128) if the in-kernel relayout proves cheap.

    v_lane = _round_up(V, 128)
    onehot_row_cap = max(8, (ONEHOT_VMEM_CAP // (v_lane * 2)) // 8 * 8)

    if tok_blk is None:
        if use_resident:
            tok_blk = min(512, onehot_row_cap)
            if tok_blk >= 256:
                tok_blk = (tok_blk // 256) * 256         # MXU-tile friendly (v6e/v7x)
            elif tok_blk >= 128:
                tok_blk = 128
        else:
            tok_blk = 256
    tok_blk = max(8, _round_up(int(tok_blk), 8))
    tok_blk = min(tok_blk, _round_up(n_tok, 8))
    if use_resident:
        tok_blk = min(tok_blk, onehot_row_cap)           # bound the one-hot temp

    flat_ids = ids.reshape(-1).astype(jnp.int32)
    gamma2 = gamma.reshape(1, D).astype(jnp.float32)
    beta2 = beta.reshape(1, D).astype(jnp.float32)

    if use_resident:
        n_pad = _round_up(n_tok, tok_blk)
        n_blocks = n_pad // tok_blk
        ids_res = flat_ids
        if n_pad != n_tok:
            # Pad with token 0 (the padding row); padded outputs sliced away.
            ids_res = jnp.concatenate(
                [ids_res, jnp.zeros((n_pad - n_tok,), jnp.int32)])
        ids2d = ids_res.reshape(n_pad, 1)
        emb_res = emb_table.astype(jnp.bfloat16)

        approx = (table_vmem_bytes                                    # resident table (x1)
                  + 2 * _vmem_padded_bytes(tok_blk, 1, 4)             # ids blocks
                  + 2 * _vmem_padded_bytes(tok_blk, D, out_itemsize)  # out blocks
                  + 3 * _vmem_padded_bytes(tok_blk, V, 4)             # iota/cmp/one-hot temps
                  + 6 * _vmem_padded_bytes(tok_blk, D, 4))            # gather + LN temps
        vmem_limit = int(max(16 * 1024 * 1024,
                             min(vmem_cap - 8 * 1024 * 1024,
                                 max(32 * 1024 * 1024, 2 * approx))))

        out_flat = pl.pallas_call(
            _embed_ln_resident_kernel,
            out_shape=jax.ShapeDtypeStruct((n_pad, D), out_dtype),
            grid_spec=pltpu.PrefetchScalarGridSpec(
                num_scalar_prefetch=0,
                grid=(n_blocks,),
                in_specs=[
                    pl.BlockSpec((tok_blk, 1), lambda i: (i, 0)),        # token ids
                    pl.BlockSpec(memory_space=pltpu.MemorySpace.VMEM),   # table (resident once)
                    pl.BlockSpec(memory_space=pltpu.MemorySpace.VMEM),   # gamma
                    pl.BlockSpec(memory_space=pltpu.MemorySpace.VMEM),   # beta
                ],
                out_specs=pl.BlockSpec((tok_blk, D), lambda i: (i, 0)),
            ),
            compiler_params=pltpu.CompilerParams(
                dimension_semantics=("parallel",),       # token blocks independent
                vmem_limit_bytes=vmem_limit),
        )(ids2d, emb_res, gamma2, beta2)
    else:
        n_blocks = -(-n_tok // tok_blk)
        n_outer = 2 if n_blocks >= 2 else 1              # 2 streams -> v7x megacore
        n_inner = -(-n_blocks // n_outer)
        n_blocks = n_outer * n_inner
        n_pad = n_blocks * tok_blk

        # Pad with token 0 for block padding, plus (NBUF-1) extra blocks so the
        # prefetch index math never leaves the SMEM ids array.
        extra = (n_pad - n_tok) + (DMA_NBUF - 1) * tok_blk
        ids_dma = flat_ids
        if extra:
            ids_dma = jnp.concatenate([ids_dma, jnp.zeros((extra,), jnp.int32)])

        approx = (DMA_NBUF * _vmem_padded_bytes(tok_blk, D, tbl_itemsize)  # gather bufs
                  + 2 * _vmem_padded_bytes(tok_blk, D, out_itemsize)       # out blocks
                  + 6 * _vmem_padded_bytes(tok_blk, D, 4))                 # LN temps
        vmem_limit = int(max(16 * 1024 * 1024,
                             min(vmem_cap - 8 * 1024 * 1024,
                                 max(32 * 1024 * 1024, 2 * approx))))

        issue_unroll = True if tok_blk <= 32 else 8
        kernel = functools.partial(_embed_ln_dma_kernel, tok_blk=tok_blk,
                                   n_inner=n_inner, nbuf=DMA_NBUF,
                                   unroll=issue_unroll)
        out_flat = pl.pallas_call(
            kernel,
            out_shape=jax.ShapeDtypeStruct((n_pad, D), out_dtype),
            grid_spec=pltpu.PrefetchScalarGridSpec(
                num_scalar_prefetch=1,                   # flat ids -> SMEM
                grid=(n_outer, n_inner),
                in_specs=[
                    pl.BlockSpec(memory_space=pltpu.MemorySpace.VMEM),   # gamma
                    pl.BlockSpec(memory_space=pltpu.MemorySpace.VMEM),   # beta
                    pl.BlockSpec(memory_space=pl.ANY),                   # table in HBM
                ],
                out_specs=pl.BlockSpec(
                    (tok_blk, D), lambda o, i, ids: (o * n_inner + i, 0)),
                scratch_shapes=[
                    pltpu.VMEM((DMA_NBUF, tok_blk, D), emb_table.dtype),  # gather bufs
                    pltpu.SemaphoreType.DMA((DMA_NBUF,)),                 # per-slot sems
                ],
            ),
            compiler_params=pltpu.CompilerParams(
                # Outer axis: independent block streams (both v7x TensorCores);
                # inner axis carries the per-core DMA prefetch pipeline.
                dimension_semantics=("parallel", "arbitrary"),
                vmem_limit_bytes=vmem_limit),
        )(ids_dma, gamma2, beta2, emb_table)

    return out_flat[:n_tok].reshape(B, S, D)


def reference_forward(ids, emb_table, gamma, beta):
    e = emb_table[ids].astype(jnp.float32)
    mean = e.mean(-1, keepdims=True)
    var = ((e - mean) ** 2).mean(-1, keepdims=True)
    return (e - mean) / jnp.sqrt(var + EPS) * gamma + beta


if __name__ == "__main__":
    d_model = 32
    vocab_size = 64
    B, S = 2, 8

    key = jax.random.PRNGKey(0)
    k_emb, k_ids, k_g, k_b, k_ids2 = jax.random.split(key, 5)

    # nn.Embedding init: N(0, 1) weights, row `padding_idx`=0 zeroed out.
    emb_table = jax.random.normal(k_emb, (vocab_size, d_model), dtype=jnp.float32)
    emb_table = emb_table.at[0].set(0.0)
    # LayerNorm affine params (perturbed from default 1/0 to exercise the affine).
    gamma = 1.0 + 0.1 * jax.random.normal(k_g, (d_model,), dtype=jnp.float32)
    beta = 0.1 * jax.random.normal(k_b, (d_model,), dtype=jnp.float32)

    ids = jax.random.randint(k_ids, (B, S), 0, vocab_size, dtype=jnp.int32)
    ids = ids.at[0, 0].set(0)   # exercise the padding_idx row too

    ref = reference_forward(ids, emb_table, gamma, beta)

    # Path A: resident bf16 table + one-hot MXU gather (explicit block size).
    out_a = embedding_forward(ids, emb_table, gamma, beta, tok_blk=8)
    out_a = jax.block_until_ready(out_a)
    assert out_a.shape == (B, S, d_model)
    # Resident path stores the table in bf16 -> explicit bf16-rounding tolerance.
    assert jnp.allclose(out_a, ref, atol=3e-2, rtol=2e-2), "resident path mismatch"

    # Path A with automatic block sizing.
    out_a2 = jax.block_until_ready(embedding_forward(ids, emb_table, gamma, beta))
    assert jnp.allclose(out_a2, ref, atol=3e-2, rtol=2e-2), "resident (auto) mismatch"

    # Path B: HBM table + multi-buffered row-DMA gather (f32, near-exact).
    out_b = embedding_forward(ids, emb_table, gamma, beta, tok_blk=8, force_dma=True)
    out_b = jax.block_until_ready(out_b)
    assert out_b.shape == (B, S, d_model)
    assert jnp.allclose(out_b, ref, atol=1e-4, rtol=1e-4), "dma path mismatch"

    # Path B with a longer sequence so the (2, n_inner) grid and the 3-deep
    # DMA prefetch pipeline are actually exercised (n_inner > 1).
    ids_long = jax.random.randint(k_ids2, (2, 40), 0, vocab_size, dtype=jnp.int32)
    ref_long = reference_forward(ids_long, emb_table, gamma, beta)
    out_b2 = embedding_forward(ids_long, emb_table, gamma, beta,
                               tok_blk=8, force_dma=True)
    out_b2 = jax.block_until_ready(out_b2)
    assert jnp.allclose(out_b2, ref_long, atol=1e-4, rtol=1e-4), "dma path (long) mismatch"

    print("KERNEL_OK")
</pallas_src>

<mosaic_0001>
module attributes {stable_mosaic.version = 11 : i64} {
  func.func @_embed_ln_resident_kernel(%arg0: i32, %arg1: memref<8x1xi32, #tpu.memory_space<vmem>>, %arg2: memref<64x32xbf16, #tpu.memory_space<vmem>>, %arg3: memref<1x32xf32, #tpu.memory_space<vmem>>, %arg4: memref<1x32xf32, #tpu.memory_space<vmem>>, %arg5: memref<8x32xf32, #tpu.memory_space<vmem>>) attributes {dimension_semantics = [#tpu.dimension_semantics<parallel>], iteration_bounds = array<i64: 2>, scalar_prefetch = 0 : i64, scratch_operands = 0 : i64, tpu.core_type = #tpu.core_type<tc>, window_params = [{transform_indices = @transform_0, window_bounds = array<i64: 8, 1>}, {pipeline_mode = #tpu.pipeline_mode<synchronous>, transform_indices = @transform_1, window_bounds = array<i64: 64, 32>}, {pipeline_mode = #tpu.pipeline_mode<synchronous>, transform_indices = @transform_2, window_bounds = array<i64: 1, 32>}, {pipeline_mode = #tpu.pipeline_mode<synchronous>, transform_indices = @transform_3, window_bounds = array<i64: 1, 32>}, {transform_indices = @transform_4, window_bounds = array<i64: 8, 32>}]} {
    %c0 = arith.constant 0 : index
    %c0_0 = arith.constant 0 : index
    %0 = vector.load %arg1[%c0, %c0_0] : memref<8x1xi32, #tpu.memory_space<vmem>>, vector<8x1xi32>
    %1 = tpu.iota {dimensions = array<i32: 1>} : vector<8x64xi32>
    %2 = vector.broadcast %0 : vector<8x1xi32> to vector<8x64xi32>
    %3 = arith.cmpi eq, %1, %2 : vector<8x64xi32>
    %4 = arith.extui %3 : vector<8x64xi1> to vector<8x64xi32>
    %5 = arith.sitofp %4 : vector<8x64xi32> to vector<8x64xf32>
    %6 = arith.truncf %5 : vector<8x64xf32> to vector<8x64xbf16>
    %c0_1 = arith.constant 0 : index
    %c0_2 = arith.constant 0 : index
    %7 = vector.load %arg2[%c0_1, %c0_2] : memref<64x32xbf16, #tpu.memory_space<vmem>>, vector<64x32xbf16>
    %cst = arith.constant dense<0.000000e+00> : vector<8x32xf32>
    %8 = tpu.matmul %6, %7, %cst {dimension_numbers = #tpu.dot_dimension_numbers<[1], [0], [0], [1], [0, 0, 1, 1], [], []>} : vector<8x64xbf16>, vector<64x32xbf16>, vector<8x32xf32> -> vector<8x32xf32>
    %c0_3 = arith.constant 0 : index
    %c0_4 = arith.constant 0 : index
    %9 = vector.load %arg3[%c0_3, %c0_4] : memref<1x32xf32, #tpu.memory_space<vmem>>, vector<1x32xf32>
    %c0_5 = arith.constant 0 : index
    %c0_6 = arith.constant 0 : index
    %10 = vector.load %arg4[%c0_5, %c0_6] : memref<1x32xf32, #tpu.memory_space<vmem>>, vector<1x32xf32>
    %cst_7 = arith.constant dense<0.000000e+00> : vector<8xf32>
    %11 = vector.multi_reduction <add>, %8, %cst_7 [1] : vector<8x32xf32> to vector<8xf32>
    %12 = vector.shape_cast %11 : vector<8xf32> to vector<8x1xf32>
    %cst_8 = arith.constant 3.200000e+01 : f32
    %13 = vector.broadcast %cst_8 : f32 to vector<8x1xf32>
    %14 = arith.divf %12, %13 : vector<8x1xf32>
    %15 = vector.broadcast %14 : vector<8x1xf32> to vector<8x32xf32>
    %16 = arith.subf %8, %15 : vector<8x32xf32>
    %17 = arith.mulf %16, %16 : vector<8x32xf32>
    %cst_9 = arith.constant dense<0.000000e+00> : vector<8xf32>
    %18 = vector.multi_reduction <add>, %17, %cst_9 [1] : vector<8x32xf32> to vector<8xf32>
    %19 = vector.shape_cast %18 : vector<8xf32> to vector<8x1xf32>
    %cst_10 = arith.constant 3.200000e+01 : f32
    %20 = vector.broadcast %cst_10 : f32 to vector<8x1xf32>
    %21 = arith.divf %19, %20 : vector<8x1xf32>
    %cst_11 = arith.constant 9.99999974E-6 : f32
    %22 = vector.broadcast %cst_11 : f32 to vector<8x1xf32>
    %23 = arith.addf %21, %22 : vector<8x1xf32>
    %24 = math.rsqrt %23 : vector<8x1xf32>
    %25 = vector.broadcast %24 : vector<8x1xf32> to vector<8x32xf32>
    %26 = arith.mulf %16, %25 : vector<8x32xf32>
    %27 = vector.broadcast %9 : vector<1x32xf32> to vector<8x32xf32>
    %28 = arith.mulf %26, %27 : vector<8x32xf32>
    %29 = vector.broadcast %10 : vector<1x32xf32> to vector<8x32xf32>
    %30 = arith.addf %28, %29 : vector<8x32xf32>
    %c0_12 = arith.constant 0 : index
    %c0_13 = arith.constant 0 : index
    %31 = vector.load %arg5[%c0_12, %c0_13] : memref<8x32xf32, #tpu.memory_space<vmem>>, vector<8x32xf32>
    tpu.vector_store %arg5[%c0_12, %c0_13], %30 {strides = array<i32>} : memref<8x32xf32, #tpu.memory_space<vmem>>, vector<8x32xf32>,
    return
  }
  func.func @transform_0(%arg0: i32) -> (i32, i32) {
    %c0_i32 = arith.constant 0 : i32
    %c0_i32_0 = arith.constant 0 : i32
    return %arg0, %c0_i32 : i32, i32
  }
  func.func @transform_1(%arg0: i32) -> (i32, i32) {
    %c0_i32 = arith.constant 0 : i32
    %c0_i32_0 = arith.constant 0 : i32
    %c0_i32_1 = arith.constant 0 : i32
    return %c0_i32, %c0_i32_0 : i32, i32
  }
  func.func @transform_2(%arg0: i32) -> (i32, i32) {
    %c0_i32 = arith.constant 0 : i32
    %c0_i32_0 = arith.constant 0 : i32
    %c0_i32_1 = arith.constant 0 : i32
    return %c0_i32, %c0_i32_0 : i32, i32
  }
  func.func @transform_3(%arg0: i32) -> (i32, i32) {
    %c0_i32 = arith.constant 0 : i32
    %c0_i32_0 = arith.constant 0 : i32
    %c0_i32_1 = arith.constant 0 : i32
    return %c0_i32, %c0_i32_0 : i32, i32
  }
  func.func @transform_4(%arg0: i32) -> (i32, i32) {
    %c0_i32 = arith.constant 0 : i32
    %c0_i32_0 = arith.constant 0 : i32
    return %arg0, %c0_i32 : i32, i32
  }
}

</mosaic_0001>

<llo_original>
// kernel: tpu_custom_call.1
$region0: #{tpu_custom_call.1}
  #allocation0 [shape = 'u32[]', space=smem, size = 0x4, offset = 0x4, fixed_abs, tag = 'smem constant byte address 0x4 - core index']
  #allocation1 [shape = 'u32[144,128]{1,0:T(1,128)}', space=vmem, size = 0x12000, scoped, tag = 'internal scratch']
  %s0 = inlined_call_operand.vmem [shape: s32[16,1], index: 0, kind: input, shape index: {}]
  %s1 = inlined_call_operand.vmem [shape: bf16[64,32], index: 1, kind: input, shape index: {}]
  %s2 = inlined_call_operand.vmem [shape: f32[1,32], index: 2, kind: input, shape index: {}]
  %s3 = inlined_call_operand.vmem [shape: f32[1,32], index: 3, kind: input, shape index: {}]
  %s4 = inlined_call_operand.hbm [shape: f32[16,32], index: 4, kind: output, shape index: {}]
  %s5 = sld [smem:[#allocation0]]
  $region49: #{tpu_custom_call.1} parent=0
    _
  %s7 = ssub.s32 1, %s5
  %s8 = scalar_select 0, %s7, %s5
  $region1: #{tpu_custom_call.1} parent=0
    #allocation2 [shape = 'u8[8192]{0}', space=vmem, size = 0x2000, scoped, tag = 'output window, operand 0']
    #allocation3 [shape = 's32[2]{0}', space=sflag, size = 0x8, scoped, tag = 'scoped memory for tpu_custom_call.1']
    %9 = vsyncpa [#allocation3], 0
    %s10 = scalar_lea.sflag [#allocation3], 1
    %11 = vsyncpa %s10, 0
    loop: start=0, step=1, limit=4
    $region2: #{tpu_custom_call.1} parent=1 // loop_pre_header
      _
    $region3: #{tpu_custom_call.1} parent=1 // loop_header
      %s13 = sphi 0, %s17
      %p14 = scmp.ge.s32.totalorder %s13, 4
      %s23 = sphi 0, %s25
      %s26 = sphi 0, %s23
      %s27 = sphi 0, %s26
      %s43 = sphi 0, %s27
      %s47 = sphi 0, %s47
      %s49 = sphi 0, %s47
      %s50 = sphi 0, %s49
      %s64 = sphi 0, %s50
      %s68 = sphi 0, %s68
      %s70 = sphi 0, %s68
      %s71 = sphi 0, %s70
      %s85 = sphi 0, %s71
      %s89 = sphi 0, %s89
      %s91 = sphi 0, %s89
      %s92 = sphi 0, %s91
      %s106 = sphi 0, %s92
      %s112 = sphi 0, %s114
      %s115 = sphi 0, %s112
      %s116 = sphi 0, %s115
      %s132 = sphi 0, %s116
    $region4: #{tpu_custom_call.1} parent=1 // loop_header_branch
      %16 = sbr.rel (%p14) target = $region8
    $region5: #{tpu_custom_call.1} parent=1 // loop_body
      %s18 = ssub.s32 %s13, 1
      %s19 = ssub.s32 %s13, 2
      %s20 = sadd.s32 %s13, 1
      %s21 = ssub.s32 %s13, %s20
      %p22 = scmp.eq.s32.totalorder %s21, 0
      %s24 = sadd.s32 %s23, 1
      %s25 = scalar_select %p22, %s23, %s24
      %p28 = pneg %p22
      %p29 = scmp.eq.s32.totalorder %s13, 1
      %p30 = por %p28, %p29
      %p31 = scmp.ne.s32.totalorder %s23, %s26
      %p32 = scmp.eq.s32.totalorder %s13, 0
      %p33 = por %p31, %p32
      %p34 = scmp.ne.s32.totalorder %s23, %s26
      %p35 = scmp.eq.s32.totalorder %s18, 1
      %p36 = por %p34, %p35
      %p37 = scmp.ne.s32.totalorder %s26, %s27
      %p38 = scmp.eq.s32.totalorder %s18, 0
      %p39 = por %p37, %p38
      %p40 = scmp.ne.s32.totalorder %s26, %s27
      %p41 = scmp.eq.s32.totalorder %s19, 1
      %p42 = por %p40, %p41
      %p44 = scmp.ne.s32.totalorder %s27, %s43
      %p45 = scmp.eq.s32.totalorder %s19, 0
      %p46 = por %p44, %p45
      %s48 = sadd.s32 %s47, 1
      %p51 = scmp.eq.s32.totalorder %s13, 1
      %p52 = scmp.ne.s32.totalorder %s47, %s49
      %p53 = scmp.eq.s32.totalorder %s13, 0
      %p54 = por %p52, %p53
      %p55 = scmp.ne.s32.totalorder %s47, %s49
      %p56 = scmp.eq.s32.totalorder %s18, 1
      %p57 = por %p55, %p56
      %p58 = scmp.ne.s32.totalorder %s49, %s50
      %p59 = scmp.eq.s32.totalorder %s18, 0
      %p60 = por %p58, %p59
      %p61 = scmp.ne.s32.totalorder %s49, %s50
      %p62 = scmp.eq.s32.totalorder %s19, 1
      %p63 = por %p61, %p62
      %p65 = scmp.ne.s32.totalorder %s50, %s64
      %p66 = scmp.eq.s32.totalorder %s19, 0
      %p67 = por %p65, %p66
      %s69 = sadd.s32 %s68, 1
      %p72 = scmp.eq.s32.totalorder %s13, 1
      %p73 = scmp.ne.s32.totalorder %s68, %s70
      %p74 = scmp.eq.s32.totalorder %s13, 0
      %p75 = por %p73, %p74
      %p76 = scmp.ne.s32.totalorder %s68, %s70
      %p77 = scmp.eq.s32.totalorder %s18, 1
      %p78 = por %p76, %p77
      %p79 = scmp.ne.s32.totalorder %s70, %s71
      %p80 = scmp.eq.s32.totalorder %s18, 0
      %p81 = por %p79, %p80
      %p82 = scmp.ne.s32.totalorder %s70, %s71
      %p83 = scmp.eq.s32.totalorder %s19, 1
      %p84 = por %p82, %p83
      %p86 = scmp.ne.s32.totalorder %s71, %s85
      %p87 = scmp.eq.s32.totalorder %s19, 0
      %p88 = por %p86, %p87
      %s90 = sadd.s32 %s89, 1
      %p93 = scmp.eq.s32.totalorder %s13, 1
      %p94 = scmp.ne.s32.totalorder %s89, %s91
      %p95 = scmp.eq.s32.totalorder %s13, 0
      %p96 = por %p94, %p95
      %p97 = scmp.ne.s32.totalorder %s89, %s91
      %p98 = scmp.eq.s32.totalorder %s18, 1
      %p99 = por %p97, %p98
      %p100 = scmp.ne.s32.totalorder %s91, %s92
      %p101 = scmp.eq.s32.totalorder %s18, 0
      %p102 = por %p100, %p101
      %p103 = scmp.ne.s32.totalorder %s91, %s92
      %p104 = scmp.eq.s32.totalorder %s19, 1
      %p105 = por %p103, %p104
      %p107 = scmp.ne.s32.totalorder %s92, %s106
      %p108 = scmp.eq.s32.totalorder %s19, 0
      %p109 = por %p107, %p108
      %s110 = ssub.s32 %s13, %s20
      %p111 = scmp.eq.s32.totalorder %s110, 0
      %s113 = sadd.s32 %s112, 1
      %s114 = scalar_select %p111, %s112, %s113
      %p117 = pneg %p111
      %p118 = scmp.eq.s32.totalorder %s13, 1
      %p119 = por %p117, %p118
      %p120 = scmp.ne.s32.totalorder %s112, %s115
      %p121 = scmp.eq.s32.totalorder %s13, 0
      %p122 = por %p120, %p121
      %p123 = scmp.ne.s32.totalorder %s112, %s115
      %p124 = scmp.eq.s32.totalorder %s18, 1
      %p125 = por %p123, %p124
      %p126 = scmp.ne.s32.totalorder %s115, %s116
      %p127 = scmp.eq.s32.totalorder %s18, 0
      %p128 = por %p126, %p127
      %p129 = scmp.ne.s32.totalorder %s115, %s116
      %p130 = scmp.eq.s32.totalorder %s19, 1
      %p131 = por %p129, %p130
      %p133 = scmp.ne.s32.totalorder %s116, %s132
      %p134 = scmp.eq.s32.totalorder %s19, 0
      %p135 = por %p133, %p134
      %p136 = scmp.le.s32.totalorder 1, %s13
      %p137 = scmp.lt.s32.totalorder %s13, 3
      %p138 = pnand %p136, %p137
      %p139 = pneg %p138
      // Predicated region
      $region9: #{tpu_custom_call.1} parent=5 // pred_check
        _
      $region10: #{tpu_custom_call.1} parent=5 // pred_check_branch
        %141 = sbr.rel (%p138) target = $region12
      $region11: #{tpu_custom_call.1} parent=5 // pred_region
        %s142 = ssub.s32 %s13, 1
        // Predicated region
        $region13: #{tpu_custom_call.1} parent=11 // pred_check
          %p143 = pneg %p60
        $region14: #{tpu_custom_call.1} parent=11 // pred_check_branch
          %145 = sbr.rel (%p143) target = $region16
        $region15: #{tpu_custom_call.1} parent=11 // pred_region
          _
        $region16: #{tpu_custom_call.1} parent=11 // pred_fallthru
          _
        // Predicated region
        $region17: #{tpu_custom_call.1} parent=11 // pred_check
          %p146 = pneg %p81
        $region18: #{tpu_custom_call.1} parent=11 // pred_check_branch
          %148 = sbr.rel (%p146) target = $region20
        $region19: #{tpu_custom_call.1} parent=11 // pred_region
          _
        $region20: #{tpu_custom_call.1} parent=11 // pred_fallthru
          _
        // Predicated region
        $region21: #{tpu_custom_call.1} parent=11 // pred_check
          %p149 = pneg %p102
        $region22: #{tpu_custom_call.1} parent=11 // pred_check_branch
          %151 = sbr.rel (%p149) target = $region24
        $region23: #{tpu_custom_call.1} parent=11 // pred_region
          _
        $region24: #{tpu_custom_call.1} parent=11 // pred_fallthru
          _
      $region12: #{tpu_custom_call.1} parent=5 // pred_fallthru
        _
      %p152 = scmp.lt.s32.totalorder %s13, 2
      // Predicated region
      $region25: #{tpu_custom_call.1} parent=5 // pred_check
        %p153 = pneg %p152
      $region26: #{tpu_custom_call.1} parent=5 // pred_check_branch
        %155 = sbr.rel (%p153) target = $region28
      $region27: #{tpu_custom_call.1} parent=5 // pred_region
        // Predicated region
        $region29: #{tpu_custom_call.1} parent=27 // pred_check
          %p156 = pneg %p33
        $region30: #{tpu_custom_call.1} parent=27 // pred_check_branch
          %158 = sbr.rel (%p156) target = $region32
        $region31: #{tpu_custom_call.1} parent=27 // pred_region
          %p159 = scmp.lt.s32.totalorder %s13, 1
          %s160 = scalar_select %p159, %s13, 1
          %s161 = smul.addr %s160, 8
          %s162 = scalar_lea.vmem %s0, %s161
        $region32: #{tpu_custom_call.1} parent=27 // pred_fallthru
          _
      $region28: #{tpu_custom_call.1} parent=5 // pred_fallthru
        _
      %p163 = scmp.le.s32.totalorder 1, %s13
      %p164 = scmp.lt.s32.totalorder %s13, 3
      %p165 = pnand %p163, %p164
      %p166 = pneg %p165
      // Predicated region
      $region33: #{tpu_custom_call.1} parent=5 // pred_check
        _
      $region34: #{tpu_custom_call.1} parent=5 // pred_check_branch
        %168 = sbr.rel (%p165) target = $region36
      $region35: #{tpu_custom_call.1} parent=5 // pred_region
        %s169 = ssub.s32 %s13, 1
        %p170 = scmp.lt.s32.totalorder %s18, 1
        %s171 = scalar_select %p170, %s18, 1
        %s172 = smul.addr %s171, 8
        %s173 = scalar_lea.vmem %s0, %s172
        %p174 = pneg %p39
        %p175 = pneg %p36
        %p176 = pneg %p60
        %p177 = pneg %p57
        %p178 = pneg %p81
        %p179 = pneg %p78
        %p180 = pneg %p102
        %p181 = pneg %p99
        %p182 = pneg %p128
        %p183 = pneg %p125
        %s184 = sand.u32 %s115, 1
        %s185 = scalar_lea.sflag [#allocation3], %s184
        %s186 = sand.u32 %s115, 1
        %s187 = smul.addr %s186, 8
        %s188 = scalar_lea.vmem [#allocation2], %s187
        %p189 = scmp.lt.s32.totalorder %s18, 1
        %s190 = scalar_select %p189, %s18, 1
        %s191 = smul.addr %s190, 8
        %s192 = scalar_lea.vmem %s0, %s191
        %v194 = vld [vmem:[%s192] sm:$0xff]
        %v195 = vlaneseq
        %v196 = vand.u32 %v195, 127
        %197 = vset.pattern.permute.xlu0 0
        %198 = vperm.xlu0 %197, %v194
        %v199 = vpop.permute.xlu0 %198
        %vm200 = vcmp.eq.s32.totalorder %v196, %v199
        %v201 = vsel %vm200, 1, 0
        %v202 = vcvt.s32.f32 %v201
        %v203 = vpack.c.bf16 %v202, %v202
        %v204 = vld [vmem:[%s1] sm:$0xf]
        %v205 = vld [vmem:[%s1 + $0x4] sm:$0xf]
        %v206 = vld [vmem:[%s1 + $0x8] sm:$0xf]
        %v207 = vld [vmem:[%s1 + $0xc] sm:$0xf]
        %v208 = vld [vmem:[%s1 + $0x10] sm:$0xf]
        %v209 = vld [vmem:[%s1 + $0x14] sm:$0xf]
        %v210 = vld [vmem:[%s1 + $0x18] sm:$0xf]
        %v211 = vld [vmem:[%s1 + $0x1c] sm:$0xf]
        %v220 = vunpack.c.l.b16 %v204
        %v221 = vunpack.c.l.b16 %v205
        %v222 = vunpack.c.l.b16 %v206
        %v223 = vunpack.c.l.b16 %v207
        %v224 = vunpack.c.l.b16 %v208
        %v225 = vunpack.c.l.b16 %v209
        %v226 = vunpack.c.l.b16 %v210
        %v227 = vunpack.c.l.b16 %v211
        %v228 = vpack.c.b16 %v221, %v220
        %v229 = vpack.c.b16 %v223, %v222
        %v230 = vpack.c.b16 %v225, %v224
        %v231 = vpack.c.b16 %v227, %v226
        %vm236 = vcmask 523264
        %v238 = vsel %vm236, %v203, 0
        %240 = vmatprep.subr.bf16.mxu0 0
        %241 = vmatpush1.bf16.msra.mxu0 %v228
        %242 = vmatprep.subr.bf16.mxu0 0
        %243 = vmatpush1.bf16.msra.mxu0 %v229
        %244 = vmatprep.subr.bf16.mxu0 0
        %245 = vmatpush1.bf16.msra.mxu0 %v230
        %246 = vmatprep.subr.bf16.mxu0 0
        %247 = vmatpush1.bf16.msra.mxu0 %v231
        %248 = vmatprep.subr.bf16.mxu0 0
        %249 = vmatpush1.bf16.msra.mxu0 0
        %250 = vmatprep.subr.bf16.mxu0 0
        %251 = vmatpush1.bf16.msra.mxu0 0
        %252 = vmatprep.subr.bf16.mxu0 0
        %253 = vmatpush1.bf16.msra.mxu0 0
        %254 = vmatprep.subr.bf16.mxu0 0
        %255 = vmatpush1.bf16.msra.mxu0 0
        %256 = vmatprep.subr.bf16.mxu0 0
        %257 = vmatpush1.bf16.msra.mxu0 0
        %258 = vmatprep.subr.bf16.mxu0 0
        %259 = vmatpush1.bf16.msra.mxu0 0
        %260 = vmatprep.subr.bf16.mxu0 0
        %261 = vmatpush1.bf16.msra.mxu0 0
        %262 = vmatprep.subr.bf16.mxu0 0
        %263 = vmatpush1.bf16.msra.mxu0 0
        %264 = vmatprep.subr.bf16.mxu0 0
        %265 = vmatpush1.bf16.msra.mxu0 0
        %266 = vmatprep.subr.bf16.mxu0 0
        %267 = vmatpush1.bf16.msra.mxu0 0
        %268 = vmatprep.subr.bf16.mxu0 0
        %269 = vmatpush1.bf16.msra.mxu0 0
        %270 = vmatprep.subr.bf16.mxu0 0
        %271 = vmatpush1.bf16.msra.mxu0 0
        %272 = vmatprep.mubr.bf16.mxu0 0
        %273 = vmatmul.mubr.bf16.gmra.mrb[0].mxu0 %v238
        %v274 = vpop.f32.mrb[0].mxu0
        %v275 = vadd.f32 0.0, %v274
        %v276 = vpop.f32.mrb[0].mxu0
        %v277 = vpop.f32.mrb[0].mxu0
        %v278 = vpop.f32.mrb[0].mxu0
        %279 = vdwg.mxu0
        %v280 = vld [vmem:[%s2] sm:$0x1]
        %v281 = vld [vmem:[%s3] sm:$0x1]
        %vm282 = vcmask 261120
        %v283 = vsel %vm282, %v275, 0.0
        %284 = vadd.xlane.f32.xlu0 %v283
        %v285 = vpop.xlane.xlu0 %284
        %v286 = vrcp.pop 32.0
        %v287 = vmul.f32 %v285, %v286
        %v288 = vsub.f32 %v275, %v287
        %v289 = vmul.f32 %v288, %v288
        %v290 = vsel %vm282, %v289, 0.0
        %291 = vadd.xlane.f32.xlu0 %v290
        %v292 = vpop.xlane.xlu0 %291
        %v293 = vmul.f32 %v292, %v286
        %v294 = vadd.f32 %v293, 1e-05
        %v295 = vrsqrt.pop %v294
        %v296 = vmul.f32 %v288, %v295
        %v298 = vlaneseq
        %v299 = vshrl.u32 %v298, 7
        %v300 = vsub.s32 0, %v299
        %v301 = vrot.slane %v280, %v300
        %v303 = vmul.f32 %v296, %v301
        %v305 = vlaneseq
        %v306 = vshrl.u32 %v305, 7
        %v307 = vsub.s32 0, %v306
        %v308 = vrot.slane %v281, %v307
        %v310 = vadd.f32 %v303, %v308
        %311 = vst.msk [vmem:[%s188] sm:$0xff] %vm282, %v310
        %s312 = sand.u32 %s115, 1
        %s313 = scalar_lea.sflag [#allocation3], %s312
        %s314 = sand.u32 %s115, 1
        %s315 = smul.addr %s314, 8
        %s316 = scalar_lea.vmem [#allocation2], %s315
        // Predicated region
        $region37: #{tpu_custom_call.1} parent=35 // pred_check
          %p317 = pneg %p125
        $region38: #{tpu_custom_call.1} parent=35 // pred_check_branch
          %319 = sbr.rel (%p317) target = $region40
        $region39: #{tpu_custom_call.1} parent=35 // pred_region
          %s321 = ssub.s32 128, 128
          %322 = vsyncadd %s313, %s321
          %s323 = smul.addr %s18, 128
          %s324 = scalar_lea.hbm %s4, %s323
          %s326 = sshll.u32 %s316, 4
          %s327 = int_to_ptr.vmem [resolvable:$true] %s326
          %329 = dma.vmem_to_hbm [thread:$0]  %s327, 128, %s324, %s313
        $region40: #{tpu_custom_call.1} parent=35 // pred_fallthru
          _
      $region36: #{tpu_custom_call.1} parent=5 // pred_fallthru
        _
      %p330 = scmp.le.s32.totalorder 2, %s13
      // Predicated region
      $region41: #{tpu_custom_call.1} parent=5 // pred_check
        %p331 = pneg %p330
      $region42: #{tpu_custom_call.1} parent=5 // pred_check_branch
        %333 = sbr.rel (%p331) target = $region44
      $region43: #{tpu_custom_call.1} parent=5 // pred_region
        %s334 = ssub.s32 %s13, 2
        // Predicated region
        $region45: #{tpu_custom_call.1} parent=43 // pred_check
          %p335 = pneg %p131
        $region46: #{tpu_custom_call.1} parent=43 // pred_check_branch
          %337 = sbr.rel (%p335) target = $region48
        $region47: #{tpu_custom_call.1} parent=43 // pred_region
          %s338 = sand.u32 %s116, 1
          %s339 = scalar_lea.sflag [#allocation3], %s338
          %s340 = sand.u32 %s116, 1
          %s341 = smul.addr %s340, 8
          %s342 = scalar_lea.vmem [#allocation2], %s341
          %343 = dma.done %s339, 128
        $region48: #{tpu_custom_call.1} parent=43 // pred_fallthru
          _
      $region44: #{tpu_custom_call.1} parent=5 // pred_fallthru
        _
    $region6: #{tpu_custom_call.1} parent=1 // loop_footer
      %s17 = sadd.s32 1, %s13
    $region7: #{tpu_custom_call.1} parent=1 // loop_footer_branch
      %12 = sbr.rel target = $region3
    $region8: #{tpu_custom_call.1} parent=1 // loop_exit
      _
    %344 = vsyncpa [#allocation3], 1
    %s345 = scalar_lea.sflag [#allocation3], 1
    %346 = vsyncpa %s345, 1

</llo_original>
